<compile_context>
chip_gen: v7x
topology: tpu7x:2x2x1
jax: 0.10.0
libtpu: 0.0.40
codegen_flags: <defaults>
</compile_context>

<pallas_src>
import jax
import jax.numpy as jnp
import numpy as np
from jax.experimental import pallas as pl
from jax.experimental.pallas import tpu as pltpu


def _round_up(x, m):
    return (x + m - 1) // m * m


def _lora_m_packed_kernel(x_ref, m_ref, o_ref):
    # x_ref: (tile_n, K) compute_dtype, m_ref: (K, C) compute_dtype,
    # o_ref: (tile_n, C) out_dtype.  One MXU pass, f32 accumulation.
    o_ref[...] = jnp.dot(
        x_ref[...], m_ref[...], preferred_element_type=jnp.float32
    ).astype(o_ref.dtype)


def fed_lora_m_stack(x, lora_m, *, token_tile=512, compute_dtype=jnp.bfloat16):
    """Apply x[l, t] @ lora_m[l, t] for every (layer, target) pair.

    x:      (L, T, N, r_v2c)
    lora_m: (L, T, r_v2c, r_c2v)
    returns (L, T, N, r_c2v), dtype of x.
    """
    L, T, N, r_v2c = x.shape
    r_c2v = lora_m.shape[-1]
    G = L * T
    K = G * r_v2c            # packed contraction dim (= 128 for default config)
    C = G * r_c2v            # packed, lane-dense output dim
    out_dtype = x.dtype

    # ---- trace-time packing (plain XLA in the wrapper, not in the kernel) ---
    # x -> (N, K): column block g = l*T + t holds x[l, t].
    x_packed = x.reshape(G, N, r_v2c).transpose(1, 0, 2).reshape(N, K)
    # lora_m -> block-diagonal (K, C): diagonal block g is lora_m[l, t].
    m_flat = lora_m.reshape(G, r_v2c, r_c2v)
    eye = jnp.eye(G, dtype=lora_m.dtype)
    m_bd = (m_flat[:, :, None, :] * eye[:, None, :, None]).reshape(K, C)

    # bf16 inputs, f32 accumulation on the MXU.  (If quantizing further:
    # int8 is a v5e/v6e-only path; the v7x MXU only has fp8, not int.)
    x_packed = x_packed.astype(compute_dtype)
    m_bd = m_bd.astype(compute_dtype)

    # ---- token tiling --------------------------------------------------------
    tile_n = min(token_tile, _round_up(N, 8))
    n_pad = _round_up(N, tile_n)
    if n_pad != N:
        x_packed = jnp.pad(x_packed, ((0, n_pad - N), (0, 0)))
    num_tiles = n_pad // tile_n

    out_packed = pl.pallas_call(
        _lora_m_packed_kernel,
        out_shape=jax.ShapeDtypeStruct((n_pad, C), out_dtype),
        grid=(num_tiles,),
        in_specs=[
            pl.BlockSpec((tile_n, K), lambda n: (n, 0)),
            # Same block every step -> weight stays resident in VMEM,
            # no re-DMA per token tile.
            pl.BlockSpec((K, C), lambda n: (0, 0)),
        ],
        out_specs=pl.BlockSpec((tile_n, C), lambda n: (n, 0)),
        compiler_params=pltpu.CompilerParams(
            dimension_semantics=("parallel",),
        ),
    )(x_packed, m_bd)

    # ---- unpack back to (L, T, N, r_c2v) ------------------------------------
    out = out_packed[:N].reshape(N, G, r_c2v).transpose(1, 0, 2)
    return out.reshape(L, T, N, r_c2v)


if __name__ == "__main__":
    # Small shapes consistent with the module's __init__:
    #   r_v2c, r_c2v define each lora_M; one M per (layer, target_module).
    r_v2c = 32
    r_c2v = 16
    target_modules = ["q_proj", "v_proj"]        # T = 2
    num_layers_to_transform = 2                  # L = 2
    tokens = 8                                   # batch*seq of recv'd activation

    L, T = num_layers_to_transform, len(target_modules)

    key = jax.random.PRNGKey(0)
    kx, km = jax.random.split(key)

    # Module initializes lora_M to zeros; use small random values so the
    # matmul path is exercised non-trivially — shapes identical.
    lora_m = 0.02 * jax.random.normal(km, (L, T, r_v2c, r_c2v), dtype=jnp.float32)

    # Stand-in for sock_channel.recv_tensor() per (layer, target).
    x = jax.random.normal(kx, (L, T, tokens, r_v2c), dtype=jnp.float32)

    out = jax.block_until_ready(fed_lora_m_stack(x, lora_m))

    # Reference: identical bf16-rounded inputs, f32 math in numpy, so only the
    # accumulation order differs from the MXU path.
    xb = np.asarray(x.astype(jnp.bfloat16).astype(jnp.float32))
    mb = np.asarray(lora_m.astype(jnp.bfloat16).astype(jnp.float32))
    ref = np.einsum("ltnr,ltrc->ltnc", xb, mb)
    np.testing.assert_allclose(np.asarray(out), ref, rtol=1e-4, atol=1e-5)

    # Also exercise the token-tiled path (grid > 1, with row padding).
    n_big = 300
    x_big = jax.random.normal(kx, (L, T, n_big, r_v2c), dtype=jnp.float32)
    out_big = jax.block_until_ready(
        fed_lora_m_stack(x_big, lora_m, token_tile=128)
    )
    xbig_b = np.asarray(x_big.astype(jnp.bfloat16).astype(jnp.float32))
    ref_big = np.einsum("ltnr,ltrc->ltnc", xbig_b, mb)
    np.testing.assert_allclose(np.asarray(out_big), ref_big, rtol=1e-4, atol=1e-5)

    # TODO(synk): sock_channel.recv_tensor()/send_tensor() I/O has no Pallas
    # equivalent; activations are passed in/out as stacked arrays instead.
    print("KERNEL_OK")
</pallas_src>

<mosaic_0001>
module attributes {stable_mosaic.version = 11 : i64} {
  func.func @_lora_m_packed_kernel(%arg0: i32, %arg1: memref<8x128xbf16, #tpu.memory_space<vmem>>, %arg2: memref<128x64xbf16, #tpu.memory_space<vmem>>, %arg3: memref<8x64xf32, #tpu.memory_space<vmem>>) attributes {dimension_semantics = [#tpu.dimension_semantics<parallel>], iteration_bounds = array<i64: 1>, scalar_prefetch = 0 : i64, scratch_operands = 0 : i64, tpu.core_type = #tpu.core_type<tc>, window_params = [{transform_indices = @transform_0, window_bounds = array<i64: 8, 128>}, {pipeline_mode = #tpu.pipeline_mode<synchronous>, transform_indices = @transform_1, window_bounds = array<i64: 128, 64>}, {transform_indices = @transform_2, window_bounds = array<i64: 8, 64>}]} {
    %c0 = arith.constant 0 : index
    %c0_0 = arith.constant 0 : index
    %0 = vector.load %arg1[%c0, %c0_0] : memref<8x128xbf16, #tpu.memory_space<vmem>>, vector<8x128xbf16>
    %c0_1 = arith.constant 0 : index
    %c0_2 = arith.constant 0 : index
    %1 = vector.load %arg2[%c0_1, %c0_2] : memref<128x64xbf16, #tpu.memory_space<vmem>>, vector<128x64xbf16>
    %cst = arith.constant dense<0.000000e+00> : vector<8x64xf32>
    %2 = tpu.matmul %0, %1, %cst {dimension_numbers = #tpu.dot_dimension_numbers<[1], [0], [0], [1], [0, 0, 1, 1], [], []>} : vector<8x128xbf16>, vector<128x64xbf16>, vector<8x64xf32> -> vector<8x64xf32>
    %c0_3 = arith.constant 0 : index
    %c0_4 = arith.constant 0 : index
    %3 = vector.load %arg3[%c0_3, %c0_4] : memref<8x64xf32, #tpu.memory_space<vmem>>, vector<8x64xf32>
    tpu.vector_store %arg3[%c0_3, %c0_4], %2 {strides = array<i32>} : memref<8x64xf32, #tpu.memory_space<vmem>>, vector<8x64xf32>,
    return
  }
  func.func @transform_0(%arg0: i32) -> (i32, i32) {
    %c0_i32 = arith.constant 0 : i32
    %c0_i32_0 = arith.constant 0 : i32
    return %arg0, %c0_i32 : i32, i32
  }
  func.func @transform_1(%arg0: i32) -> (i32, i32) {
    %c0_i32 = arith.constant 0 : i32
    %c0_i32_0 = arith.constant 0 : i32
    %c0_i32_1 = arith.constant 0 : i32
    return %c0_i32, %c0_i32_0 : i32, i32
  }
  func.func @transform_2(%arg0: i32) -> (i32, i32) {
    %c0_i32 = arith.constant 0 : i32
    %c0_i32_0 = arith.constant 0 : i32
    return %arg0, %c0_i32 : i32, i32
  }
}

</mosaic_0001>

<llo_original>
// kernel: tpu_custom_call.1
$region0: #{tpu_custom_call.1}
  #allocation0 [shape = 'u32[]', space=smem, size = 0x4, offset = 0x4, fixed_abs, tag = 'smem constant byte address 0x4 - core index']
  #allocation1 [shape = 'u32[144,128]{1,0:T(1,128)}', space=vmem, size = 0x12000, scoped, tag = 'internal scratch']
  %s0 = inlined_call_operand.vmem [shape: bf16[8,128], index: 0, kind: input, shape index: {}]
  %s1 = inlined_call_operand.vmem [shape: bf16[128,64], index: 1, kind: input, shape index: {}]
  %s2 = inlined_call_operand.hbm [shape: f32[8,64], index: 2, kind: output, shape index: {}]
  %s3 = sld [smem:[#allocation0]]
  $region18: #{tpu_custom_call.1} parent=0
    _
  %s5 = ssub.s32 1, %s3
  %s6 = scalar_select 0, %s5, %s3
  $region1: #{tpu_custom_call.1} parent=0
    #allocation2 [shape = 'u8[4096]{0}', space=vmem, size = 0x1000, scoped, tag = 'output window, operand 0, single buffered']
    #allocation3 [shape = 's32[1]{0}', space=sflag, size = 0x4, scoped, tag = 'scoped memory for tpu_custom_call.1']
    %7 = vsyncpa [#allocation3], 0
    // Predicated region
    $region2: #{tpu_custom_call.1} parent=1 // pred_check
      _
    $region3: #{tpu_custom_call.1} parent=1 // pred_check_branch
      %9 = sbr.rel (0) target = $region5
    $region4: #{tpu_custom_call.1} parent=1 // pred_region
      _
    $region5: #{tpu_custom_call.1} parent=1 // pred_fallthru
      _
    // Predicated region
    $region6: #{tpu_custom_call.1} parent=1 // pred_check
      _
    $region7: #{tpu_custom_call.1} parent=1 // pred_check_branch
      %11 = sbr.rel (0) target = $region9
    $region8: #{tpu_custom_call.1} parent=1 // pred_region
      _
    $region9: #{tpu_custom_call.1} parent=1 // pred_fallthru
      _
    %v13 = vld [vmem:[%s0] sm:$0xf]
    %v14 = vld [vmem:[%s1] sm:$0xf]
    %v15 = vld [vmem:[%s1 + $0x4] sm:$0xf]
    %v16 = vld [vmem:[%s1 + $0x8] sm:$0xf]
    %v17 = vld [vmem:[%s1 + $0xc] sm:$0xf]
    %v18 = vld [vmem:[%s1 + $0x10] sm:$0xf]
    %v19 = vld [vmem:[%s1 + $0x14] sm:$0xf]
    %v20 = vld [vmem:[%s1 + $0x18] sm:$0xf]
    %v21 = vld [vmem:[%s1 + $0x1c] sm:$0xf]
    %v22 = vld [vmem:[%s1 + $0x20] sm:$0xf]
    %v23 = vld [vmem:[%s1 + $0x24] sm:$0xf]
    %v24 = vld [vmem:[%s1 + $0x28] sm:$0xf]
    %v25 = vld [vmem:[%s1 + $0x2c] sm:$0xf]
    %v26 = vld [vmem:[%s1 + $0x30] sm:$0xf]
    %v27 = vld [vmem:[%s1 + $0x34] sm:$0xf]
    %v28 = vld [vmem:[%s1 + $0x38] sm:$0xf]
    %v29 = vld [vmem:[%s1 + $0x3c] sm:$0xf]
    %v46 = vunpack.c.l.b16 %v14
    %v47 = vunpack.c.l.b16 %v15
    %v48 = vunpack.c.l.b16 %v16
    %v49 = vunpack.c.l.b16 %v17
    %v50 = vunpack.c.l.b16 %v18
    %v51 = vunpack.c.l.b16 %v19
    %v52 = vunpack.c.l.b16 %v20
    %v53 = vunpack.c.l.b16 %v21
    %v54 = vunpack.c.l.b16 %v22
    %v55 = vunpack.c.l.b16 %v23
    %v56 = vunpack.c.l.b16 %v24
    %v57 = vunpack.c.l.b16 %v25
    %v58 = vunpack.c.l.b16 %v26
    %v59 = vunpack.c.l.b16 %v27
    %v60 = vunpack.c.l.b16 %v28
    %v61 = vunpack.c.l.b16 %v29
    %v62 = vpack.c.b16 %v47, %v46
    %v63 = vpack.c.b16 %v49, %v48
    %v64 = vpack.c.b16 %v51, %v50
    %v65 = vpack.c.b16 %v53, %v52
    %v66 = vpack.c.b16 %v55, %v54
    %v67 = vpack.c.b16 %v57, %v56
    %v68 = vpack.c.b16 %v59, %v58
    %v69 = vpack.c.b16 %v61, %v60
    %78 = vmatprep.subr.bf16.mxu0 0
    %79 = vmatpush1.bf16.msra.mxu0 %v62
    %80 = vmatprep.subr.bf16.mxu0 0
    %81 = vmatpush1.bf16.msra.mxu0 %v63
    %82 = vmatprep.subr.bf16.mxu0 0
    %83 = vmatpush1.bf16.msra.mxu0 %v64
    %84 = vmatprep.subr.bf16.mxu0 0
    %85 = vmatpush1.bf16.msra.mxu0 %v65
    %86 = vmatprep.subr.bf16.mxu0 0
    %87 = vmatpush1.bf16.msra.mxu0 %v66
    %88 = vmatprep.subr.bf16.mxu0 0
    %89 = vmatpush1.bf16.msra.mxu0 %v67
    %90 = vmatprep.subr.bf16.mxu0 0
    %91 = vmatpush1.bf16.msra.mxu0 %v68
    %92 = vmatprep.subr.bf16.mxu0 0
    %93 = vmatpush1.bf16.msra.mxu0 %v69
    %94 = vmatprep.subr.bf16.mxu0 0
    %95 = vmatpush1.bf16.msra.mxu0 0
    %96 = vmatprep.subr.bf16.mxu0 0
    %97 = vmatpush1.bf16.msra.mxu0 0
    %98 = vmatprep.subr.bf16.mxu0 0
    %99 = vmatpush1.bf16.msra.mxu0 0
    %100 = vmatprep.subr.bf16.mxu0 0
    %101 = vmatpush1.bf16.msra.mxu0 0
    %102 = vmatprep.subr.bf16.mxu0 0
    %103 = vmatpush1.bf16.msra.mxu0 0
    %104 = vmatprep.subr.bf16.mxu0 0
    %105 = vmatpush1.bf16.msra.mxu0 0
    %106 = vmatprep.subr.bf16.mxu0 0
    %107 = vmatpush1.bf16.msra.mxu0 0
    %108 = vmatprep.subr.bf16.mxu0 0
    %109 = vmatpush1.bf16.msra.mxu0 0
    %110 = vmatprep.mubr.bf16.mxu0 0
    %111 = vmatmul.mubr.bf16.gmra.mrb[0].mxu0 %v13
    %v112 = vpop.f32.mrb[0].mxu0
    %v113 = vadd.f32 0.0, %v112
    %v114 = vpop.f32.mrb[0].mxu0
    %v115 = vpop.f32.mrb[0].mxu0
    %v116 = vpop.f32.mrb[0].mxu0
    %117 = vdwg.mxu0
    %vm118 = vcmask 523264
    %119 = vst.msk [vmem:[#allocation2] sm:$0xff] %vm118, %v113
    // Predicated region
    $region10: #{tpu_custom_call.1} parent=1 // pred_check
      _
    $region11: #{tpu_custom_call.1} parent=1 // pred_check_branch
      %121 = sbr.rel (0) target = $region13
    $region12: #{tpu_custom_call.1} parent=1 // pred_region
      %s123 = ssub.s32 128, 128
      %124 = vsyncadd [#allocation3], %s123
      %s126 = sshll.u32 [#allocation2], 4
      %s127 = int_to_ptr.vmem [resolvable:$true] %s126
      %129 = dma.vmem_to_hbm [thread:$0]  %s127, 128, %s2, [#allocation3]
    $region13: #{tpu_custom_call.1} parent=1 // pred_fallthru
      _
    // Predicated region
    $region14: #{tpu_custom_call.1} parent=1 // pred_check
      _
    $region15: #{tpu_custom_call.1} parent=1 // pred_check_branch
      %131 = sbr.rel (0) target = $region17
    $region16: #{tpu_custom_call.1} parent=1 // pred_region
      %132 = dma.done [#allocation3], 128
    $region17: #{tpu_custom_call.1} parent=1 // pred_fallthru
      _
    %133 = vsyncpa [#allocation3], 1

</llo_original>
